<compile_context>
chip_gen: v7x
topology: tpu7x:2x2x1
jax: 0.10.0
libtpu: 0.0.40
codegen_flags: <defaults>
</compile_context>

<pallas_src>
import jax
import jax.numpy as jnp
from jax.experimental import pallas as pl
from jax.experimental.pallas import tpu as pltpu


def _nconv_kernel(at_ref, x_ref, o_ref):
    # at_ref: (W, V)    A^T, resident every step (constant index_map)
    # x_ref : (BT, V, L) row tile of x in its native layout
    # o_ref : (BT, W, L) row tile of the output in its native layout
    bt = x_ref.shape[0]
    at_b = jnp.broadcast_to(at_ref[...], (bt,) + at_ref.shape)   # (BT, W, V)
    # out[b, w, l] = sum_v A[v, w] * x[b, v, l]   (batched MXU matmul, f32 acc)
    y = jnp.einsum("bwv,bvl->bwl", at_b, x_ref[...],
                   preferred_element_type=jnp.float32)
    o_ref[...] = y.astype(o_ref.dtype)


def _round_up(n, m):
    return ((n + m - 1) // m) * m


def _choose_block_rows(B, V, W, L, x_itemsize, out_itemsize):
    """Row tile (BT) along the fused N*C axis.

    VMEM footprint per row uses the lane-padded layout (last dim L pads up to
    a multiple of 128 lanes in VMEM): double-buffered x tile + double-buffered
    out tile + the f32 A^T broadcast temp. The budget is conservative so the
    same tile also fits v7x (64 MiB physical, 32 MiB default scoped) — never
    size against v5e/v6e's 128 MiB.
    """
    lane_l = max(_round_up(L, 128), 128)
    lane_v = max(_round_up(V, 128), 128)
    per_row = (2 * V * lane_l * x_itemsize        # x tile, double-buffered
               + 2 * W * lane_l * out_itemsize    # out tile, double-buffered
               + W * lane_v * 4)                  # A^T broadcast temp (f32)
    budget = 24 * 1024 * 1024
    bt = max(8, min(budget // max(per_row, 1), 4096))
    bt = (bt // 8) * 8
    b8 = _round_up(B, 8)
    if bt >= b8:
        # Whole problem fits in one step. If there is enough work to amortize
        # the ~0.35 us per-step overhead, split into >= 2 steps so the
        # "parallel" grid axis can feed both of v7x's TensorCores.
        bt = _round_up(pl.cdiv(B, 2), 8) if B > 256 else b8
    return bt


def nconv(x, A, *, block_rows=None, use_pallas=True):
    """x: (N, C, V, L), A: (V, W) -> (N, C, W, L); matches torch.einsum('ncvl,vw->ncwl')."""
    N, C, V, L = x.shape
    Va, W = A.shape
    assert Va == V, f"A first dim {Va} must match x V dim {V}"
    out_dtype = jnp.result_type(x.dtype, A.dtype)   # einsum dtype-promotion parity

    if not use_pallas:
        return jnp.einsum("ncvl,vw->ncwl", x, A)

    B = N * C
    x3 = x.reshape(B, V, L)              # free: contiguous leading-dim collapse
    a_t = jnp.transpose(A, (1, 0))       # (W, V), tiny, done once in the wrapper

    x_it = jnp.dtype(x.dtype).itemsize
    a_it = jnp.dtype(A.dtype).itemsize
    o_it = jnp.dtype(out_dtype).itemsize
    bt = block_rows if block_rows is not None else _choose_block_rows(
        B, V, W, L, x_it, o_it)
    grid = (pl.cdiv(B, bt),)

    cost = pl.CostEstimate(
        flops=2 * B * V * W * L,
        bytes_accessed=x_it * B * V * L + a_it * V * W + o_it * B * W * L,
        transcendentals=0,
    )

    out3 = pl.pallas_call(
        _nconv_kernel,
        out_shape=jax.ShapeDtypeStruct((B, W, L), out_dtype),
        grid_spec=pltpu.PrefetchScalarGridSpec(
            num_scalar_prefetch=0,
            grid=grid,
            in_specs=[
                # A^T is tiny and its block never changes -> DMA'd once, resident.
                pl.BlockSpec((W, V), lambda i: (0, 0)),
                # Contiguous row tile of x in its native (B, V, L) layout.
                pl.BlockSpec((bt, V, L), lambda i: (i, 0, 0)),
            ],
            out_specs=pl.BlockSpec((bt, W, L), lambda i: (i, 0, 0)),
        ),
        compiler_params=pltpu.CompilerParams(
            # Independent row tiles; shards across v7x's 2 TensorCores.
            # TODO(synk): if profiling shows a plain "parallel" axis is not
            # split across v7x's two TensorCores, switch to pltpu.CORE_PARALLEL.
            dimension_semantics=("parallel",),
            vmem_limit_bytes=48 * 1024 * 1024,
        ),
        cost_estimate=cost,
    )(a_t, x3)

    return out3.reshape(N, C, W, L)      # free: contiguous leading-dim split


if __name__ == "__main__":
    key = jax.random.PRNGKey(0)
    kx, ka, kx2, ka2 = jax.random.split(key, 4)

    # 1) Main check at the demo shapes.
    N, C, V, L, W = 2, 4, 16, 16, 16
    x = jax.random.normal(kx, (N, C, V, L), dtype=jnp.float32)
    A = jax.random.normal(ka, (V, W), dtype=jnp.float32)
    out = jax.block_until_ready(nconv(x, A))
    ref = jnp.einsum("ncvl,vw->ncwl", x, A)
    assert out.shape == (N, C, W, L), out.shape
    assert out.dtype == ref.dtype, (out.dtype, ref.dtype)
    assert jnp.allclose(out, ref, atol=1e-5, rtol=1e-5), "mismatch vs reference"

    # 2) Partial-block check: B = N*C not a multiple of the row tile, so the
    #    last grid step reads/writes out of bounds and must be masked correctly.
    N2, C2 = 3, 5
    x2 = jax.random.normal(kx2, (N2, C2, V, L), dtype=jnp.float32)
    A2 = jax.random.normal(ka2, (V, W), dtype=jnp.float32)
    out2 = jax.block_until_ready(nconv(x2, A2, block_rows=4))
    ref2 = jnp.einsum("ncvl,vw->ncwl", x2, A2)
    assert jnp.allclose(out2, ref2, atol=1e-5, rtol=1e-5), "partial-block mismatch"

    # 3) Dtype-promotion parity: bf16 x with f32 A must come out f32 like einsum.
    out3 = jax.block_until_ready(nconv(x.astype(jnp.bfloat16), A))
    ref3 = jnp.einsum("ncvl,vw->ncwl", x.astype(jnp.bfloat16), A)
    assert out3.dtype == ref3.dtype, (out3.dtype, ref3.dtype)
    assert jnp.allclose(out3, ref3, atol=1e-2, rtol=1e-2), "dtype-promotion mismatch"

    print("KERNEL_OK")
</pallas_src>

<mosaic_0001>
module attributes {stable_mosaic.version = 11 : i64} {
  func.func @_nconv_kernel(%arg0: i32, %arg1: memref<16x16xf32, #tpu.memory_space<vmem>>, %arg2: memref<8x16x16xf32, #tpu.memory_space<vmem>>, %arg3: memref<8x16x16xf32, #tpu.memory_space<vmem>>) attributes {dimension_semantics = [#tpu.dimension_semantics<parallel>], iteration_bounds = array<i64: 1>, scalar_prefetch = 0 : i64, scratch_operands = 0 : i64, tpu.core_type = #tpu.core_type<tc>, window_params = [{pipeline_mode = #tpu.pipeline_mode<synchronous>, transform_indices = @transform_0, window_bounds = array<i64: 16, 16>}, {transform_indices = @transform_1, window_bounds = array<i64: 8, 16, 16>}, {transform_indices = @transform_2, window_bounds = array<i64: 8, 16, 16>}]} {
    %c0 = arith.constant 0 : index
    %c0_0 = arith.constant 0 : index
    %0 = vector.load %arg1[%c0, %c0_0] : memref<16x16xf32, #tpu.memory_space<vmem>>, vector<16x16xf32>
    %1 = vector.shape_cast %0 : vector<16x16xf32> to vector<1x16x16xf32>
    %2 = vector.broadcast %1 : vector<1x16x16xf32> to vector<8x16x16xf32>
    %c0_1 = arith.constant 0 : index
    %c0_2 = arith.constant 0 : index
    %c0_3 = arith.constant 0 : index
    %3 = vector.load %arg2[%c0_1, %c0_2, %c0_3] : memref<8x16x16xf32, #tpu.memory_space<vmem>>, vector<8x16x16xf32>
    "tpu.trace_start"() <{level = 10 : i32, message = "bwv,bvl->bwl"}> : () -> ()
    %cst = arith.constant dense<0.000000e+00> : vector<8x16x16xf32>
    %4 = tpu.matmul %2, %3, %cst {dimension_numbers = #tpu.dot_dimension_numbers<[2], [1], [1], [2], [0, 0, 0, 1, 1, 2], [0], [0]>} : vector<8x16x16xf32>, vector<8x16x16xf32>, vector<8x16x16xf32> -> vector<8x16x16xf32>
    "tpu.trace_stop"() : () -> ()
    %c0_4 = arith.constant 0 : index
    %c0_5 = arith.constant 0 : index
    %c0_6 = arith.constant 0 : index
    %5 = vector.load %arg3[%c0_4, %c0_5, %c0_6] : memref<8x16x16xf32, #tpu.memory_space<vmem>>, vector<8x16x16xf32>
    tpu.vector_store %arg3[%c0_4, %c0_5, %c0_6], %4 {strides = array<i32>} : memref<8x16x16xf32, #tpu.memory_space<vmem>>, vector<8x16x16xf32>,
    return
  }
  func.func @transform_0(%arg0: i32) -> (i32, i32) {
    %c0_i32 = arith.constant 0 : i32
    %c0_i32_0 = arith.constant 0 : i32
    %c0_i32_1 = arith.constant 0 : i32
    return %c0_i32, %c0_i32_0 : i32, i32
  }
  func.func @transform_1(%arg0: i32) -> (i32, i32, i32) {
    %c0_i32 = arith.constant 0 : i32
    %c0_i32_0 = arith.constant 0 : i32
    %c0_i32_1 = arith.constant 0 : i32
    return %arg0, %c0_i32, %c0_i32_0 : i32, i32, i32
  }
  func.func @transform_2(%arg0: i32) -> (i32, i32, i32) {
    %c0_i32 = arith.constant 0 : i32
    %c0_i32_0 = arith.constant 0 : i32
    %c0_i32_1 = arith.constant 0 : i32
    return %arg0, %c0_i32, %c0_i32_0 : i32, i32, i32
  }
}

</mosaic_0001>

<llo_original>
// kernel: tpu_custom_call.1
$region0: #{tpu_custom_call.1}
  #allocation0 [shape = 'u32[]', space=smem, size = 0x4, offset = 0x4, fixed_abs, tag = 'smem constant byte address 0x4 - core index']
  #allocation1 [shape = 'u32[144,128]{1,0:T(1,128)}', space=vmem, size = 0x12000, scoped, tag = 'internal scratch']
  %s0 = inlined_call_operand.hbm [shape: f32[16,16], index: 0, kind: input, shape index: {}]
  %s1 = inlined_call_operand.hbm [shape: f32[8,16,16], index: 1, kind: input, shape index: {}]
  %s2 = inlined_call_operand.hbm [shape: f32[8,16,16], index: 2, kind: output, shape index: {}]
  %s3 = sld [smem:[#allocation0]]
  $region26: #{tpu_custom_call.1} parent=0
    _
  %s5 = ssub.s32 1, %s3
  %s6 = scalar_select 0, %s5, %s3
  $region1: #{tpu_custom_call.1} parent=0
    #allocation2 [shape = 'u8[8192]{0}', space=vmem, size = 0x2000, scoped, tag = 'input window, operand 0, single buffered']
    #allocation3 [shape = 's32[1]{0}', space=sflag, size = 0x4, scoped, tag = 'scoped memory for tpu_custom_call.1']
    #allocation4 [shape = 's32[1]{0}', space=sflag, size = 0x4, scoped, tag = 'scoped memory for tpu_custom_call.1']
    #allocation5 [shape = 'u8[65536]{0}', space=vmem, size = 0x10000, scoped, tag = 'input window, operand 1, single buffered']
    #allocation6 [shape = 's32[1]{0}', space=sflag, size = 0x4, scoped, tag = 'scoped memory for tpu_custom_call.1']
    #allocation7 [shape = 'u8[65536]{0}', space=vmem, size = 0x10000, scoped, tag = 'output window, operand 0, single buffered']
    %7 = vsyncpa [#allocation3], 0
    %8 = vsyncpa [#allocation6], 0
    %9 = vsyncpa [#allocation4], 0
    // Predicated region
    $region2: #{tpu_custom_call.1} parent=1 // pred_check
      _
    $region3: #{tpu_custom_call.1} parent=1 // pred_check_branch
      %11 = sbr.rel (0) target = $region5
    $region4: #{tpu_custom_call.1} parent=1 // pred_region
      %s13 = ssub.s32 256, 256
      %14 = vsyncadd [#allocation3], %s13
      %s15 = sshll.u32 [#allocation2], 4
      %s16 = int_to_ptr.vmem [resolvable:$true] %s15
      %21 = dma.hbm_to_vmem [thread:$0]  %s0, 256, %s16, [#allocation3], 128, 128, 8
    $region5: #{tpu_custom_call.1} parent=1 // pred_fallthru
      _
    // Predicated region
    $region6: #{tpu_custom_call.1} parent=1 // pred_check
      _
    $region7: #{tpu_custom_call.1} parent=1 // pred_check_branch
      %23 = sbr.rel (0) target = $region9
    $region8: #{tpu_custom_call.1} parent=1 // pred_region
      %s25 = ssub.s32 2048, 2048
      %26 = vsyncadd [#allocation6], %s25
      %s27 = sshll.u32 [#allocation5], 4
      %s28 = int_to_ptr.vmem [resolvable:$true] %s27
      %33 = dma.hbm_to_vmem [thread:$0]  %s1, 2048, %s28, [#allocation6], 128, 128, 8
    $region9: #{tpu_custom_call.1} parent=1 // pred_fallthru
      _
    // Predicated region
    $region10: #{tpu_custom_call.1} parent=1 // pred_check
      _
    $region11: #{tpu_custom_call.1} parent=1 // pred_check_branch
      %35 = sbr.rel (0) target = $region13
    $region12: #{tpu_custom_call.1} parent=1 // pred_region
      %36 = dma.done [#allocation3], 256
    $region13: #{tpu_custom_call.1} parent=1 // pred_fallthru
      _
    // Predicated region
    $region14: #{tpu_custom_call.1} parent=1 // pred_check
      _
    $region15: #{tpu_custom_call.1} parent=1 // pred_check_branch
      %38 = sbr.rel (0) target = $region17
    $region16: #{tpu_custom_call.1} parent=1 // pred_region
      %39 = dma.done [#allocation6], 2048
    $region17: #{tpu_custom_call.1} parent=1 // pred_fallthru
      _
    %v40 = vld [vmem:[#allocation2] sm:$0xff]
    %v41 = vld [vmem:[#allocation2 + $0x8] sm:$0xff]
    %v42 = vld [vmem:[#allocation5] sm:$0xff]
    %v43 = vld [vmem:[#allocation5 + $0x8] sm:$0xff]
    %v44 = vld [vmem:[#allocation5 + $0x10] sm:$0xff]
    %v45 = vld [vmem:[#allocation5 + $0x18] sm:$0xff]
    %v46 = vld [vmem:[#allocation5 + $0x20] sm:$0xff]
    %v47 = vld [vmem:[#allocation5 + $0x28] sm:$0xff]
    %v48 = vld [vmem:[#allocation5 + $0x30] sm:$0xff]
    %v49 = vld [vmem:[#allocation5 + $0x38] sm:$0xff]
    %v50 = vld [vmem:[#allocation5 + $0x40] sm:$0xff]
    %v51 = vld [vmem:[#allocation5 + $0x48] sm:$0xff]
    %v52 = vld [vmem:[#allocation5 + $0x50] sm:$0xff]
    %v53 = vld [vmem:[#allocation5 + $0x58] sm:$0xff]
    %v54 = vld [vmem:[#allocation5 + $0x60] sm:$0xff]
    %v55 = vld [vmem:[#allocation5 + $0x68] sm:$0xff]
    %v56 = vld [vmem:[#allocation5 + $0x70] sm:$0xff]
    %v57 = vld [vmem:[#allocation5 + $0x78] sm:$0xff]
    %vm58 = vcmask 130048
    %v60 = vsel %vm58, %v40, 0
    %v63 = vsel %vm58, %v41, 0
    %65 = vmatprep.subr.mxu0 0.0
    %66 = vmatpush1.msra.mxu0 %v42
    %67 = vmatprep.subr.mxu0 0.0
    %68 = vmatpush1.msra.mxu0 %v43
    %69 = vmatprep.subr.mxu0 0.0
    %70 = vmatpush1.msra.mxu0 0.0
    %71 = vmatprep.subr.mxu0 0.0
    %72 = vmatpush1.msra.mxu0 0.0
    %73 = vmatprep.subr.mxu0 0.0
    %74 = vmatpush1.msra.mxu0 0.0
    %75 = vmatprep.subr.mxu0 0.0
    %76 = vmatpush1.msra.mxu0 0.0
    %77 = vmatprep.subr.mxu0 0.0
    %78 = vmatpush1.msra.mxu0 0.0
    %79 = vmatprep.subr.mxu0 0.0
    %80 = vmatpush1.msra.mxu0 0.0
    %81 = vmatprep.subr.mxu0 0.0
    %82 = vmatpush1.msra.mxu0 0.0
    %83 = vmatprep.subr.mxu0 0.0
    %84 = vmatpush1.msra.mxu0 0.0
    %85 = vmatprep.subr.mxu0 0.0
    %86 = vmatpush1.msra.mxu0 0.0
    %87 = vmatprep.subr.mxu0 0.0
    %88 = vmatpush1.msra.mxu0 0.0
    %89 = vmatprep.subr.mxu0 0.0
    %90 = vmatpush1.msra.mxu0 0.0
    %91 = vmatprep.subr.mxu0 0.0
    %92 = vmatpush1.msra.mxu0 0.0
    %93 = vmatprep.subr.mxu0 0.0
    %94 = vmatpush1.msra.mxu0 0.0
    %95 = vmatprep.subr.mxu0 0.0
    %96 = vmatpush1.msra.mxu0 0.0
    %97 = vmatprep.subr.mxu0 0.0
    %98 = vmatpush1.msra.mxu0 0.0
    %99 = vmatprep.subr.mxu0 0.0
    %100 = vmatpush1.msra.mxu0 0.0
    %101 = vmatprep.subr.mxu0 0.0
    %102 = vmatpush1.msra.mxu0 0.0
    %103 = vmatprep.subr.mxu0 0.0
    %104 = vmatpush1.msra.mxu0 0.0
    %105 = vmatprep.subr.mxu0 0.0
    %106 = vmatpush1.msra.mxu0 0.0
    %107 = vmatprep.subr.mxu0 0.0
    %108 = vmatpush1.msra.mxu0 0.0
    %109 = vmatprep.subr.mxu0 0.0
    %110 = vmatpush1.msra.mxu0 0.0
    %111 = vmatprep.subr.mxu0 0.0
    %112 = vmatpush1.msra.mxu0 0.0
    %113 = vmatprep.subr.mxu0 0.0
    %114 = vmatpush1.msra.mxu0 0.0
    %115 = vmatprep.subr.mxu0 0.0
    %116 = vmatpush1.msra.mxu0 0.0
    %117 = vmatprep.subr.mxu0 0.0
    %118 = vmatpush1.msra.mxu0 0.0
    %119 = vmatprep.subr.mxu0 0.0
    %120 = vmatpush1.msra.mxu0 0.0
    %121 = vmatprep.subr.mxu0 0.0
    %122 = vmatpush1.msra.mxu0 0.0
    %123 = vmatprep.subr.mxu0 0.0
    %124 = vmatpush1.msra.mxu0 0.0
    %125 = vmatprep.subr.mxu0 0.0
    %126 = vmatpush1.msra.mxu0 0.0
    %127 = vmatprep.subr.mxu0 0.0
    %128 = vmatpush1.msra.mxu0 0.0
    %129 = vmatprep.mubr.f32.mxu0 0.0
    %130 = vmatmul.mubr.f32.gmra.mrb[0].mxu0 %v60
    %v131 = vpop.f32.mrb[0].mxu0
    %v132 = vadd.f32 0.0, %v131
    %v133 = vpop.f32.mrb[0].mxu0
    %134 = vmatprep.mubr.f32.mxu0 0.0
    %135 = vmatmul.mubr.f32.gmra.mrb[0].mxu0 %v63
    %v136 = vpop.f32.mrb[0].mxu0
    %v137 = vadd.f32 0.0, %v136
    %v138 = vpop.f32.mrb[0].mxu0
    %139 = vdwg.mxu0
    %140 = vmatprep.subr.mxu0 0.0
    %141 = vmatpush1.msra.mxu0 %v44
    %142 = vmatprep.subr.mxu0 0.0
    %143 = vmatpush1.msra.mxu0 %v45
    %144 = vmatprep.subr.mxu0 0.0
    %145 = vmatpush1.msra.mxu0 0.0
    %146 = vmatprep.subr.mxu0 0.0
    %147 = vmatpush1.msra.mxu0 0.0
    %148 = vmatprep.subr.mxu0 0.0
    %149 = vmatpush1.msra.mxu0 0.0
    %150 = vmatprep.subr.mxu0 0.0
    %151 = vmatpush1.msra.mxu0 0.0
    %152 = vmatprep.subr.mxu0 0.0
    %153 = vmatpush1.msra.mxu0 0.0
    %154 = vmatprep.subr.mxu0 0.0
    %155 = vmatpush1.msra.mxu0 0.0
    %156 = vmatprep.subr.mxu0 0.0
    %157 = vmatpush1.msra.mxu0 0.0
    %158 = vmatprep.subr.mxu0 0.0
    %159 = vmatpush1.msra.mxu0 0.0
    %160 = vmatprep.subr.mxu0 0.0
    %161 = vmatpush1.msra.mxu0 0.0
    %162 = vmatprep.subr.mxu0 0.0
    %163 = vmatpush1.msra.mxu0 0.0
    %164 = vmatprep.subr.mxu0 0.0
    %165 = vmatpush1.msra.mxu0 0.0
    %166 = vmatprep.subr.mxu0 0.0
    %167 = vmatpush1.msra.mxu0 0.0
    %168 = vmatprep.subr.mxu0 0.0
    %169 = vmatpush1.msra.mxu0 0.0
    %170 = vmatprep.subr.mxu0 0.0
    %171 = vmatpush1.msra.mxu0 0.0
    %172 = vmatprep.subr.mxu0 0.0
    %173 = vmatpush1.msra.mxu0 0.0
    %174 = vmatprep.subr.mxu0 0.0
    %175 = vmatpush1.msra.mxu0 0.0
    %176 = vmatprep.subr.mxu0 0.0
    %177 = vmatpush1.msra.mxu0 0.0
    %178 = vmatprep.subr.mxu0 0.0
    %179 = vmatpush1.msra.mxu0 0.0
    %180 = vmatprep.subr.mxu0 0.0
    %181 = vmatpush1.msra.mxu0 0.0
    %182 = vmatprep.subr.mxu0 0.0
    %183 = vmatpush1.msra.mxu0 0.0
    %184 = vmatprep.subr.mxu0 0.0
    %185 = vmatpush1.msra.mxu0 0.0
    %186 = vmatprep.subr.mxu0 0.0
    %187 = vmatpush1.msra.mxu0 0.0
    %188 = vmatprep.subr.mxu0 0.0
    %189 = vmatpush1.msra.mxu0 0.0
    %190 = vmatprep.subr.mxu0 0.0
    %191 = vmatpush1.msra.mxu0 0.0
    %192 = vmatprep.subr.mxu0 0.0
    %193 = vmatpush1.msra.mxu0 0.0
    %194 = vmatprep.subr.mxu0 0.0
    %195 = vmatpush1.msra.mxu0 0.0
    %196 = vmatprep.subr.mxu0 0.0
    %197 = vmatpush1.msra.mxu0 0.0
    %198 = vmatprep.subr.mxu0 0.0
    %199 = vmatpush1.msra.mxu0 0.0
    %200 = vmatprep.subr.mxu0 0.0
    %201 = vmatpush1.msra.mxu0 0.0
    %202 = vmatprep.subr.mxu0 0.0
    %203 = vmatpush1.msra.mxu0 0.0
    %204 = vmatprep.mubr.f32.mxu0 0.0
    %205 = vmatmul.mubr.f32.gmra.mrb[0].mxu0 %v60
    %v206 = vpop.f32.mrb[0].mxu0
    %v207 = vadd.f32 0.0, %v206
    %v208 = vpop.f32.mrb[0].mxu0
    %209 = vmatprep.mubr.f32.mxu0 0.0
    %210 = vmatmul.mubr.f32.gmra.mrb[0].mxu0 %v63
    %v211 = vpop.f32.mrb[0].mxu0
    %v212 = vadd.f32 0.0, %v211
    %v213 = vpop.f32.mrb[0].mxu0
    %214 = vdwg.mxu0
    %215 = vmatprep.subr.mxu0 0.0
    %216 = vmatpush1.msra.mxu0 %v46
    %217 = vmatprep.subr.mxu0 0.0
    %218 = vmatpush1.msra.mxu0 %v47
    %219 = vmatprep.subr.mxu0 0.0
    %220 = vmatpush1.msra.mxu0 0.0
    %221 = vmatprep.subr.mxu0 0.0
    %222 = vmatpush1.msra.mxu0 0.0
    %223 = vmatprep.subr.mxu0 0.0
    %224 = vmatpush1.msra.mxu0 0.0
    %225 = vmatprep.subr.mxu0 0.0
    %226 = vmatpush1.msra.mxu0 0.0
    %227 = vmatprep.subr.mxu0 0.0
    %228 = vmatpush1.msra.mxu0 0.0
    %229 = vmatprep.subr.mxu0 0.0
    %230 = vmatpush1.msra.mxu0 0.0
    %231 = vmatprep.subr.mxu0 0.0
    %232 = vmatpush1.msra.mxu0 0.0
    %233 = vmatprep.subr.mxu0 0.0
    %234 = vmatpush1.msra.mxu0 0.0
    %235 = vmatprep.subr.mxu0 0.0
    %236 = vmatpush1.msra.mxu0 0.0
    %237 = vmatprep.subr.mxu0 0.0
    %238 = vmatpush1.msra.mxu0 0.0
    %239 = vmatprep.subr.mxu0 0.0
    %240 = vmatpush1.msra.mxu0 0.0
    %241 = vmatprep.subr.mxu0 0.0
    %242 = vmatpush1.msra.mxu0 0.0
    %243 = vmatprep.subr.mxu0 0.0
    %244 = vmatpush1.msra.mxu0 0.0
    %245 = vmatprep.subr.mxu0 0.0
    %246 = vmatpush1.msra.mxu0 0.0
    %247 = vmatprep.subr.mxu0 0.0
    %248 = vmatpush1.msra.mxu0 0.0
    %249 = vmatprep.subr.mxu0 0.0
    %250 = vmatpush1.msra.mxu0 0.0
    %251 = vmatprep.subr.mxu0 0.0
    %252 = vmatpush1.msra.mxu0 0.0
    %253 = vmatprep.subr.mxu0 0.0
    %254 = vmatpush1.msra.mxu0 0.0
    %255 = vmatprep.subr.mxu0 0.0
    %256 = vmatpush1.msra.mxu0 0.0
    %257 = vmatprep.subr.mxu0 0.0
    %258 = vmatpush1.msra.mxu0 0.0
    %259 = vmatprep.subr.mxu0 0.0
    %260 = vmatpush1.msra.mxu0 0.0
    %261 = vmatprep.subr.mxu0 0.0
    %262 = vmatpush1.msra.mxu0 0.0
    %263 = vmatprep.subr.mxu0 0.0
    %264 = vmatpush1.msra.mxu0 0.0
    %265 = vmatprep.subr.mxu0 0.0
    %266 = vmatpush1.msra.mxu0 0.0
    %267 = vmatprep.subr.mxu0 0.0
    %268 = vmatpush1.msra.mxu0 0.0
    %269 = vmatprep.subr.mxu0 0.0
    %270 = vmatpush1.msra.mxu0 0.0
    %271 = vmatprep.subr.mxu0 0.0
    %272 = vmatpush1.msra.mxu0 0.0
    %273 = vmatprep.subr.mxu0 0.0
    %274 = vmatpush1.msra.mxu0 0.0
    %275 = vmatprep.subr.mxu0 0.0
    %276 = vmatpush1.msra.mxu0 0.0
    %277 = vmatprep.subr.mxu0 0.0
    %278 = vmatpush1.msra.mxu0 0.0
    %279 = vmatprep.mubr.f32.mxu0 0.0
    %280 = vmatmul.mubr.f32.gmra.mrb[0].mxu0 %v60
    %v281 = vpop.f32.mrb[0].mxu0
    %v282 = vadd.f32 0.0, %v281
    %v283 = vpop.f32.mrb[0].mxu0
    %284 = vmatprep.mubr.f32.mxu0 0.0
    %285 = vmatmul.mubr.f32.gmra.mrb[0].mxu0 %v63
    %v286 = vpop.f32.mrb[0].mxu0
    %v287 = vadd.f32 0.0, %v286
    %v288 = vpop.f32.mrb[0].mxu0
    %289 = vdwg.mxu0
    %290 = vmatprep.subr.mxu0 0.0
    %291 = vmatpush1.msra.mxu0 %v48
    %292 = vmatprep.subr.mxu0 0.0
    %293 = vmatpush1.msra.mxu0 %v49
    %294 = vmatprep.subr.mxu0 0.0
    %295 = vmatpush1.msra.mxu0 0.0
    %296 = vmatprep.subr.mxu0 0.0
    %297 = vmatpush1.msra.mxu0 0.0
    %298 = vmatprep.subr.mxu0 0.0
    %299 = vmatpush1.msra.mxu0 0.0
    %300 = vmatprep.subr.mxu0 0.0
    %301 = vmatpush1.msra.mxu0 0.0
    %302 = vmatprep.subr.mxu0 0.0
    %303 = vmatpush1.msra.mxu0 0.0
    %304 = vmatprep.subr.mxu0 0.0
    %305 = vmatpush1.msra.mxu0 0.0
    %306 = vmatprep.subr.mxu0 0.0
    %307 = vmatpush1.msra.mxu0 0.0
    %308 = vmatprep.subr.mxu0 0.0
    %309 = vmatpush1.msra.mxu0 0.0
    %310 = vmatprep.subr.mxu0 0.0
    %311 = vmatpush1.msra.mxu0 0.0
    %312 = vmatprep.subr.mxu0 0.0
    %313 = vmatpush1.msra.mxu0 0.0
    %314 = vmatprep.subr.mxu0 0.0
    %315 = vmatpush1.msra.mxu0 0.0
    %316 = vmatprep.subr.mxu0 0.0
    %317 = vmatpush1.msra.mxu0 0.0
    %318 = vmatprep.subr.mxu0 0.0
    %319 = vmatpush1.msra.mxu0 0.0
    %320 = vmatprep.subr.mxu0 0.0
    %321 = vmatpush1.msra.mxu0 0.0
    %322 = vmatprep.subr.mxu0 0.0
    %323 = vmatpush1.msra.mxu0 0.0
    %324 = vmatprep.subr.mxu0 0.0
    %325 = vmatpush1.msra.mxu0 0.0
    %326 = vmatprep.subr.mxu0 0.0
    %327 = vmatpush1.msra.mxu0 0.0
    %328 = vmatprep.subr.mxu0 0.0
    %329 = vmatpush1.msra.mxu0 0.0
    %330 = vmatprep.subr.mxu0 0.0
    %331 = vmatpush1.msra.mxu0 0.0
    %332 = vmatprep.subr.mxu0 0.0
    %333 = vmatpush1.msra.mxu0 0.0
    %334 = vmatprep.subr.mxu0 0.0
    %335 = vmatpush1.msra.mxu0 0.0
    %336 = vmatprep.subr.mxu0 0.0
    %337 = vmatpush1.msra.mxu0 0.0
    %338 = vmatprep.subr.mxu0 0.0
    %339 = vmatpush1.msra.mxu0 0.0
    %340 = vmatprep.subr.mxu0 0.0
    %341 = vmatpush1.msra.mxu0 0.0
    %342 = vmatprep.subr.mxu0 0.0
    %343 = vmatpush1.msra.mxu0 0.0
    %344 = vmatprep.subr.mxu0 0.0
    %345 = vmatpush1.msra.mxu0 0.0
    %346 = vmatprep.subr.mxu0 0.0
    %347 = vmatpush1.msra.mxu0 0.0
    %348 = vmatprep.subr.mxu0 0.0
    %349 = vmatpush1.msra.mxu0 0.0
    %350 = vmatprep.subr.mxu0 0.0
    %351 = vmatpush1.msra.mxu0 0.0
    %352 = vmatprep.subr.mxu0 0.0
    %353 = vmatpush1.msra.mxu0 0.0
    %354 = vmatprep.mubr.f32.mxu0 0.0
    %355 = vmatmul.mubr.f32.gmra.mrb[0].mxu0 %v60
    %v356 = vpop.f32.mrb[0].mxu0
    %v357 = vadd.f32 0.0, %v356
    %v358 = vpop.f32.mrb[0].mxu0
    %359 = vmatprep.mubr.f32.mxu0 0.0
    %360 = vmatmul.mubr.f32.gmra.mrb[0].mxu0 %v63
    %v361 = vpop.f32.mrb[0].mxu0
    %v362 = vadd.f32 0.0, %v361
    %v363 = vpop.f32.mrb[0].mxu0
    %364 = vdwg.mxu0
    %365 = vmatprep.subr.mxu0 0.0
    %366 = vmatpush1.msra.mxu0 %v50
    %367 = vmatprep.subr.mxu0 0.0
    %368 = vmatpush1.msra.mxu0 %v51
    %369 = vmatprep.subr.mxu0 0.0
    %370 = vmatpush1.msra.mxu0 0.0
    %371 = vmatprep.subr.mxu0 0.0
    %372 = vmatpush1.msra.mxu0 0.0
    %373 = vmatprep.subr.mxu0 0.0
    %374 = vmatpush1.msra.mxu0 0.0
    %375 = vmatprep.subr.mxu0 0.0
    %376 = vmatpush1.msra.mxu0 0.0
    %377 = vmatprep.subr.mxu0 0.0
    %378 = vmatpush1.msra.mxu0 0.0
    %379 = vmatprep.subr.mxu0 0.0
    %380 = vmatpush1.msra.mxu0 0.0
    %381 = vmatprep.subr.mxu0 0.0
    %382 = vmatpush1.msra.mxu0 0.0
    %383 = vmatprep.subr.mxu0 0.0
    %384 = vmatpush1.msra.mxu0 0.0
    %385 = vmatprep.subr.mxu0 0.0
    %386 = vmatpush1.msra.mxu0 0.0
    %387 = vmatprep.subr.mxu0 0.0
    %388 = vmatpush1.msra.mxu0 0.0
    %389 = vmatprep.subr.mxu0 0.0
    %390 = vmatpush1.msra.mxu0 0.0
    %391 = vmatprep.subr.mxu0 0.0
    %392 = vmatpush1.msra.mxu0 0.0
    %393 = vmatprep.subr.mxu0 0.0
    %394 = vmatpush1.msra.mxu0 0.0
    %395 = vmatprep.subr.mxu0 0.0
    %396 = vmatpush1.msra.mxu0 0.0
    %397 = vmatprep.subr.mxu0 0.0
    %398 = vmatpush1.msra.mxu0 0.0
    %399 = vmatprep.subr.mxu0 0.0
    %400 = vmatpush1.msra.mxu0 0.0
    %401 = vmatprep.subr.mxu0 0.0
    %402 = vmatpush1.msra.mxu0 0.0
    %403 = vmatprep.subr.mxu0 0.0
    %404 = vmatpush1.msra.mxu0 0.0
    %405 = vmatprep.subr.mxu0 0.0
    %406 = vmatpush1.msra.mxu0 0.0
    %407 = vmatprep.subr.mxu0 0.0
    %408 = vmatpush1.msra.mxu0 0.0
    %409 = vmatprep.subr.mxu0 0.0
    %410 = vmatpush1.msra.mxu0 0.0
    %411 = vmatprep.subr.mxu0 0.0
    %412 = vmatpush1.msra.mxu0 0.0
    %413 = vmatprep.subr.mxu0 0.0
    %414 = vmatpush1.msra.mxu0 0.0
    %415 = vmatprep.subr.mxu0 0.0
    %416 = vmatpush1.msra.mxu0 0.0
    %417 = vmatprep.subr.mxu0 0.0
    %418 = vmatpush1.msra.mxu0 0.0
    %419 = vmatprep.subr.mxu0 0.0
    %420 = vmatpush1.msra.mxu0 0.0
    %421 = vmatprep.subr.mxu0 0.0
    %422 = vmatpush1.msra.mxu0 0.0
    %423 = vmatprep.subr.mxu0 0.0
    %424 = vmatpush1.msra.mxu0 0.0
    %425 = vmatprep.subr.mxu0 0.0
    %426 = vmatpush1.msra.mxu0 0.0
    %427 = vmatprep.subr.mxu0 0.0
    %428 = vmatpush1.msra.mxu0 0.0
    %429 = vmatprep.mubr.f32.mxu0 0.0
    %430 = vmatmul.mubr.f32.gmra.mrb[0].mxu0 %v60
    %v431 = vpop.f32.mrb[0].mxu0
    %v432 = vadd.f32 0.0, %v431
    %v433 = vpop.f32.mrb[0].mxu0
    %434 = vmatprep.mubr.f32.mxu0 0.0
    %435 = vmatmul.mubr.f32.gmra.mrb[0].mxu0 %v63
    %v436 = vpop.f32.mrb[0].mxu0
    %v437 = vadd.f32 0.0, %v436
    %v438 = vpop.f32.mrb[0].mxu0
    %439 = vdwg.mxu0
    %440 = vmatprep.subr.mxu0 0.0
    %441 = vmatpush1.msra.mxu0 %v52
    %442 = vmatprep.subr.mxu0 0.0
    %443 = vmatpush1.msra.mxu0 %v53
    %444 = vmatprep.subr.mxu0 0.0
    %445 = vmatpush1.msra.mxu0 0.0
    %446 = vmatprep.subr.mxu0 0.0
    %447 = vmatpush1.msra.mxu0 0.0
    %448 = vmatprep.subr.mxu0 0.0
    %449 = vmatpush1.msra.mxu0 0.0
    %450 = vmatprep.subr.mxu0 0.0
    %451 = vmatpush1.msra.mxu0 0.0
    %452 = vmatprep.subr.mxu0 0.0
    %453 = vmatpush1.msra.mxu0 0.0
    %454 = vmatprep.subr.mxu0 0.0
    %455 = vmatpush1.msra.mxu0 0.0
    %456 = vmatprep.subr.mxu0 0.0
    %457 = vmatpush1.msra.mxu0 0.0
    %458 = vmatprep.subr.mxu0 0.0
    %459 = vmatpush1.msra.mxu0 0.0
    %460 = vmatprep.subr.mxu0 0.0
    %461 = vmatpush1.msra.mxu0 0.0
    %462 = vmatprep.subr.mxu0 0.0
    %463 = vmatpush1.msra.mxu0 0.0
    %464 = vmatprep.subr.mxu0 0.0
    %465 = vmatpush1.msra.mxu0 0.0
    %466 = vmatprep.subr.mxu0 0.0
    %467 = vmatpush1.msra.mxu0 0.0
    %468 = vmatprep.subr.mxu0 0.0
    %469 = vmatpush1.msra.mxu0 0.0
    %470 = vmatprep.subr.mxu0 0.0
    %471 = vmatpush1.msra.mxu0 0.0
    %472 = vmatprep.subr.mxu0 0.0
    %473 = vmatpush1.msra.mxu0 0.0
    %474 = vmatprep.subr.mxu0 0.0
    %475 = vmatpush1.msra.mxu0 0.0
    %476 = vmatprep.subr.mxu0 0.0
    %477 = vmatpush1.msra.mxu0 0.0
    %478 = vmatprep.subr.mxu0 0.0
    %479 = vmatpush1.msra.mxu0 0.0
    %480 = vmatprep.subr.mxu0 0.0
    %481 = vmatpush1.msra.mxu0 0.0
    %482 = vmatprep.subr.mxu0 0.0
    %483 = vmatpush1.msra.mxu0 0.0
    %484 = vmatprep.subr.mxu0 0.0
    %485 = vmatpush1.msra.mxu0 0.0
    %486 = vmatprep.subr.mxu0 0.0
    %487 = vmatpush1.msra.mxu0 0.0
    %488 = vmatprep.subr.mxu0 0.0
    %489 = vmatpush1.msra.mxu0 0.0
    %490 = vmatprep.subr.mxu0 0.0
    %491 = vmatpush1.msra.mxu0 0.0
    %492 = vmatprep.subr.mxu0 0.0
    %493 = vmatpush1.msra.mxu0 0.0
    %494 = vmatprep.subr.mxu0 0.0
    %495 = vmatpush1.msra.mxu0 0.0
    %496 = vmatprep.subr.mxu0 0.0
    %497 = vmatpush1.msra.mxu0 0.0
    %498 = vmatprep.subr.mxu0 0.0
    %499 = vmatpush1.msra.mxu0 0.0
    %500 = vmatprep.subr.mxu0 0.0
    %501 = vmatpush1.msra.mxu0 0.0
    %502 = vmatprep.subr.mxu0 0.0
    %503 = vmatpush1.msra.mxu0 0.0
    %504 = vmatprep.mubr.f32.mxu0 0.0
    %505 = vmatmul.mubr.f32.gmra.mrb[0].mxu0 %v60
    %v506 = vpop.f32.mrb[0].mxu0
    %v507 = vadd.f32 0.0, %v506
    %v508 = vpop.f32.mrb[0].mxu0
    %509 = vmatprep.mubr.f32.mxu0 0.0
    %510 = vmatmul.mubr.f32.gmra.mrb[0].mxu0 %v63
    %v511 = vpop.f32.mrb[0].mxu0
    %v512 = vadd.f32 0.0, %v511
    %v513 = vpop.f32.mrb[0].mxu0
    %514 = vdwg.mxu0
    %515 = vmatprep.subr.mxu0 0.0
    %516 = vmatpush1.msra.mxu0 %v54
    %517 = vmatprep.subr.mxu0 0.0
    %518 = vmatpush1.msra.mxu0 %v55
    %519 = vmatprep.subr.mxu0 0.0
    %520 = vmatpush1.msra.mxu0 0.0
    %521 = vmatprep.subr.mxu0 0.0
    %522 = vmatpush1.msra.mxu0 0.0
    %523 = vmatprep.subr.mxu0 0.0
    %524 = vmatpush1.msra.mxu0 0.0
    %525 = vmatprep.subr.mxu0 0.0
    %526 = vmatpush1.msra.mxu0 0.0
    %527 = vmatprep.subr.mxu0 0.0
    %528 = vmatpush1.msra.mxu0 0.0
    %529 = vmatprep.subr.mxu0 0.0
    %530 = vmatpush1.msra.mxu0 0.0
    %531 = vmatprep.subr.mxu0 0.0
    %532 = vmatpush1.msra.mxu0 0.0
    %533 = vmatprep.subr.mxu0 0.0
    %534 = vmatpush1.msra.mxu0 0.0
    %535 = vmatprep.subr.mxu0 0.0
    %536 = vmatpush1.msra.mxu0 0.0
    %537 = vmatprep.subr.mxu0 0.0
    %538 = vmatpush1.msra.mxu0 0.0
    %539 = vmatprep.subr.mxu0 0.0
    %540 = vmatpush1.msra.mxu0 0.0
    %541 = vmatprep.subr.mxu0 0.0
    %542 = vmatpush1.msra.mxu0 0.0
    %543 = vmatprep.subr.mxu0 0.0
    %544 = vmatpush1.msra.mxu0 0.0
    %545 = vmatprep.subr.mxu0 0.0
    %546 = vmatpush1.msra.mxu0 0.0
    %547 = vmatprep.subr.mxu0 0.0
    %548 = vmatpush1.msra.mxu0 0.0
    %549 = vmatprep.subr.mxu0 0.0
    %550 = vmatpush1.msra.mxu0 0.0
    %551 = vmatprep.subr.mxu0 0.0
    %552 = vmatpush1.msra.mxu0 0.0
    %553 = vmatprep.subr.mxu0 0.0
    %554 = vmatpush1.msra.mxu0 0.0
    %555 = vmatprep.subr.mxu0 0.0
    %556 = vmatpush1.msra.mxu0 0.0
    %557 = vmatprep.subr.mxu0 0.0
    %558 = vmatpush1.msra.mxu0 0.0
    %559 = vmatprep.subr.mxu0 0.0
    %560 = vmatpush1.msra.mxu0 0.0
    %561 = vmatprep.subr.mxu0 0.0
    %562 = vmatpush1.msra.mxu0 0.0
    %563 = vmatprep.subr.mxu0 0.0
    %564 = vmatpush1.msra.mxu0 0.0
    %565 = vmatprep.subr.mxu0 0.0
    %566 = vmatpush1.msra.mxu0 0.0
    %567 = vmatprep.subr.mxu0 0.0
    %568 = vmatpush1.msra.mxu0 0.0
    %569 = vmatprep.subr.mxu0 0.0
    %570 = vmatpush1.msra.mxu0 0.0
    %571 = vmatprep.subr.mxu0 0.0
    %572 = vmatpush1.msra.mxu0 0.0
    %573 = vmatprep.subr.mxu0 0.0
    %574 = vmatpush1.msra.mxu0 0.0
    %575 = vmatprep.subr.mxu0 0.0
    %576 = vmatpush1.msra.mxu0 0.0
    %577 = vmatprep.subr.mxu0 0.0
    %578 = vmatpush1.msra.mxu0 0.0
    %579 = vmatprep.mubr.f32.mxu0 0.0
    %580 = vmatmul.mubr.f32.gmra.mrb[0].mxu0 %v60
    %v581 = vpop.f32.mrb[0].mxu0
    %v582 = vadd.f32 0.0, %v581
    %v583 = vpop.f32.mrb[0].mxu0
    %584 = vmatprep.mubr.f32.mxu0 0.0
    %585 = vmatmul.mubr.f32.gmra.mrb[0].mxu0 %v63
    %v586 = vpop.f32.mrb[0].mxu0
    %v587 = vadd.f32 0.0, %v586
    %v588 = vpop.f32.mrb[0].mxu0
    %589 = vdwg.mxu0
    %590 = vmatprep.subr.mxu0 0.0
    %591 = vmatpush1.msra.mxu0 %v56
    %592 = vmatprep.subr.mxu0 0.0
    %593 = vmatpush1.msra.mxu0 %v57
    %594 = vmatprep.subr.mxu0 0.0
    %595 = vmatpush1.msra.mxu0 0.0
    %596 = vmatprep.subr.mxu0 0.0
    %597 = vmatpush1.msra.mxu0 0.0
    %598 = vmatprep.subr.mxu0 0.0
    %599 = vmatpush1.msra.mxu0 0.0
    %600 = vmatprep.subr.mxu0 0.0
    %601 = vmatpush1.msra.mxu0 0.0
    %602 = vmatprep.subr.mxu0 0.0
    %603 = vmatpush1.msra.mxu0 0.0
    %604 = vmatprep.subr.mxu0 0.0
    %605 = vmatpush1.msra.mxu0 0.0
    %606 = vmatprep.subr.mxu0 0.0
    %607 = vmatpush1.msra.mxu0 0.0
    %608 = vmatprep.subr.mxu0 0.0
    %609 = vmatpush1.msra.mxu0 0.0
    %610 = vmatprep.subr.mxu0 0.0
    %611 = vmatpush1.msra.mxu0 0.0
    %612 = vmatprep.subr.mxu0 0.0
    %613 = vmatpush1.msra.mxu0 0.0
    %614 = vmatprep.subr.mxu0 0.0
    %615 = vmatpush1.msra.mxu0 0.0
    %616 = vmatprep.subr.mxu0 0.0
    %617 = vmatpush1.msra.mxu0 0.0
    %618 = vmatprep.subr.mxu0 0.0
    %619 = vmatpush1.msra.mxu0 0.0
    %620 = vmatprep.subr.mxu0 0.0
    %621 = vmatpush1.msra.mxu0 0.0
    %622 = vmatprep.subr.mxu0 0.0
    %623 = vmatpush1.msra.mxu0 0.0
    %624 = vmatprep.subr.mxu0 0.0
    %625 = vmatpush1.msra.mxu0 0.0
    %626 = vmatprep.subr.mxu0 0.0
    %627 = vmatpush1.msra.mxu0 0.0
    %628 = vmatprep.subr.mxu0 0.0
    %629 = vmatpush1.msra.mxu0 0.0
    %630 = vmatprep.subr.mxu0 0.0
    %631 = vmatpush1.msra.mxu0 0.0
    %632 = vmatprep.subr.mxu0 0.0
    %633 = vmatpush1.msra.mxu0 0.0
    %634 = vmatprep.subr.mxu0 0.0
    %635 = vmatpush1.msra.mxu0 0.0
    %636 = vmatprep.subr.mxu0 0.0
    %637 = vmatpush1.msra.mxu0 0.0
    %638 = vmatprep.subr.mxu0 0.0
    %639 = vmatpush1.msra.mxu0 0.0
    %640 = vmatprep.subr.mxu0 0.0
    %641 = vmatpush1.msra.mxu0 0.0
    %642 = vmatprep.subr.mxu0 0.0
    %643 = vmatpush1.msra.mxu0 0.0
    %644 = vmatprep.subr.mxu0 0.0
    %645 = vmatpush1.msra.mxu0 0.0
    %646 = vmatprep.subr.mxu0 0.0
    %647 = vmatpush1.msra.mxu0 0.0
    %648 = vmatprep.subr.mxu0 0.0
    %649 = vmatpush1.msra.mxu0 0.0
    %650 = vmatprep.subr.mxu0 0.0
    %651 = vmatpush1.msra.mxu0 0.0
    %652 = vmatprep.subr.mxu0 0.0
    %653 = vmatpush1.msra.mxu0 0.0
    %654 = vmatprep.mubr.f32.mxu0 0.0
    %655 = vmatmul.mubr.f32.gmra.mrb[0].mxu0 %v60
    %v656 = vpop.f32.mrb[0].mxu0
    %v657 = vadd.f32 0.0, %v656
    %v658 = vpop.f32.mrb[0].mxu0
    %659 = vmatprep.mubr.f32.mxu0 0.0
    %660 = vmatmul.mubr.f32.gmra.mrb[0].mxu0 %v63
    %v661 = vpop.f32.mrb[0].mxu0
    %v662 = vadd.f32 0.0, %v661
    %v663 = vpop.f32.mrb[0].mxu0
    %664 = vdwg.mxu0
    %665 = vst.msk [vmem:[#allocation7] sm:$0xff] %vm58, %v132
    %666 = vst.msk [vmem:[#allocation7 + $0x8] sm:$0xff] %vm58, %v137
    %667 = vst.msk [vmem:[#allocation7 + $0x10] sm:$0xff] %vm58, %v207
    %668 = vst.msk [vmem:[#allocation7 + $0x18] sm:$0xff] %vm58, %v212
    %669 = vst.msk [vmem:[#allocation7 + $0x20] sm:$0xff] %vm58, %v282
    %670 = vst.msk [vmem:[#allocation7 + $0x28] sm:$0xff] %vm58, %v287
    %671 = vst.msk [vmem:[#allocation7 + $0x30] sm:$0xff] %vm58, %v357
    %672 = vst.msk [vmem:[#allocation7 + $0x38] sm:$0xff] %vm58, %v362
    %673 = vst.msk [vmem:[#allocation7 + $0x40] sm:$0xff] %vm58, %v432
    %674 = vst.msk [vmem:[#allocation7 + $0x48] sm:$0xff] %vm58, %v437
    %675 = vst.msk [vmem:[#allocation7 + $0x50] sm:$0xff] %vm58, %v507
    %676 = vst.msk [vmem:[#allocation7 + $0x58] sm:$0xff] %vm58, %v512
    %677 = vst.msk [vmem:[#allocation7 + $0x60] sm:$0xff] %vm58, %v582
    %678 = vst.msk [vmem:[#allocation7 + $0x68] sm:$0xff] %vm58, %v587
    %679 = vst.msk [vmem:[#allocation7 + $0x70] sm:$0xff] %vm58, %v657
    %680 = vst.msk [vmem:[#allocation7 + $0x78] sm:$0xff] %vm58, %v662
    // Predicated region
    $region18: #{tpu_custom_call.1} parent=1 // pred_check
      _
    $region19: #{tpu_custom_call.1} parent=1 // pred_check_branch
      %682 = sbr.rel (0) target = $region21
    $region20: #{tpu_custom_call.1} parent=1 // pred_region
      %s684 = ssub.s32 2048, 2048
      %685 = vsyncadd [#allocation4], %s684
      %s686 = sshll.u32 [#allocation7], 4
      %s687 = int_to_ptr.vmem [resolvable:$true] %s686
      %692 = dma.vmem_to_hbm [thread:$0]  %s687, 2048, %s2, [#allocation4], 128, 128, 8
    $region21: #{tpu_custom_call.1} parent=1 // pred_fallthru
      _
    // Predicated region
    $region22: #{tpu_custom_call.1} parent=1 // pred_check
      _
    $region23: #{tpu_custom_call.1} parent=1 // pred_check_branch
      %694 = sbr.rel (0) target = $region25
    $region24: #{tpu_custom_call.1} parent=1 // pred_region
      %695 = dma.done [#allocation4], 2048
    $region25: #{tpu_custom_call.1} parent=1 // pred_fallthru
      _
    %696 = vsyncpa [#allocation3], 1
    %697 = vsyncpa [#allocation6], 1
    %698 = vsyncpa [#allocation4], 1

</llo_original>
